<compile_context>
chip_gen: v5e
topology: v5e:2x2
jax: 0.10.0
libtpu: 0.0.40
codegen_flags: <defaults>
</compile_context>

<pallas_src>
import functools
import math

import jax
import jax.numpy as jnp
import numpy as np
from jax import lax
from jax.experimental import pallas as pl
from jax.experimental.pallas import tpu as pltpu


def _pair(v):
    if isinstance(v, (tuple, list)):
        assert len(v) == 2
        return (int(v[0]), int(v[1]))
    return (int(v), int(v))


def _round_up(v, m):
    return (v + m - 1) // m * m


def _conv_rs_kernel(x_ref, w_ref, b_ref, o_ref):
    """One grid point = (lane-tile n, channel-shard m); m innermost = reduction.

    x_ref : (1, CK_pad, TN)          this shard's im2col tile (lane-dense)
    w_ref : (M, C_out_pad, CK_pad)   ALL shards' flattened weights (VMEM resident)
    b_ref : (C_out_pad, 1)  f32      bias (applied on shard 0 only)
    o_ref : (C_out_pad, TN) f32      output tile; resident across the m axis,
                                     used directly as the reduce accumulator.
    NOTE: correctness relies on m being the innermost, "arbitrary" grid axis
    (the output block is the cross-shard accumulator).
    """
    m = pl.program_id(1)

    # P_apply_bias: bias is applied on the shard with channel index 0 before
    # the reduce-scatter, so after the cross-shard sum it is counted once.
    @pl.when(m == 0)
    def _():
        o_ref[...] = jnp.broadcast_to(b_ref[...], o_ref.shape)

    # Single wide MXU matmul per grid step; contraction = C_in_local*KH*KW.
    o_ref[...] += jnp.dot(w_ref[m], x_ref[0],
                          preferred_element_type=jnp.float32)


def distributed_channel_rs_conv2d(x, weight_shards, bias, *,
                                  stride=1, padding=0, dilation=1, groups=1,
                                  padding_mode="zeros", lane_tile=512,
                                  compute_dtype=None):
    """x: (B, C_in, H, W) global input (NCHW).
    weight_shards: (M, C_out, C_in // M, KH, KW) — one weight per model-parallel
    worker.  bias: (C_out,) or None.
    Returns the global output (B, C_out, H_out, W_out) (= concat of all
    workers' reduce-scatter output-channel shards).
    """
    if groups != 1:
        # TODO(synk): grouped convolutions (groups > 1) not implemented.
        raise NotImplementedError("groups != 1 not supported")

    B, C_in, H, W = x.shape
    M, C_out, C_in_local, KH, KW = weight_shards.shape
    assert C_in == M * C_in_local, "in_channels must split evenly across shards"
    assert C_out % M == 0, "out_channels must be divisible by the channel partition"

    stride = _pair(stride)
    dilation = _pair(dilation)

    # --- spatial padding (plain-JAX glue, matches _conv_forward) -------------
    if isinstance(padding, str):
        if padding == "valid":
            pads = ((0, 0), (0, 0))
        elif padding == "same":
            assert all(s == 1 for s in stride), "'same' needs stride 1"
            p = []
            for d, k in zip(dilation, (KH, KW)):
                total = d * (k - 1)
                left = total // 2
                p.append((left, total - left))
            pads = tuple(p)
        else:
            raise ValueError(f"invalid padding string {padding!r}")
    else:
        p = _pair(padding)
        pads = ((p[0], p[0]), (p[1], p[1]))

    mode_map = {"zeros": "constant", "reflect": "reflect",
                "replicate": "edge", "circular": "wrap"}
    x_pad = jnp.pad(x, ((0, 0), (0, 0), pads[0], pads[1]),
                    mode=mode_map[padding_mode])
    H_pad = H + pads[0][0] + pads[0][1]
    W_pad = W + pads[1][0] + pads[1][1]
    H_out = (H_pad - dilation[0] * (KH - 1) - 1) // stride[0] + 1
    W_out = (W_pad - dilation[1] * (KW - 1) - 1) // stride[1] + 1

    # bf16 here is the v6e/v7x MXU fast path (keep accumulation in f32).
    compute_dtype = x.dtype if compute_dtype is None else compute_dtype

    # --- im2col per channel shard (glue): strided/dilated taps leave the kernel
    x_sh = x_pad.reshape(B, M, C_in_local, H_pad, W_pad)   # contiguous shards
    taps = []
    for kh in range(KH):
        for kw in range(KW):
            h0, w0 = kh * dilation[0], kw * dilation[1]
            taps.append(lax.slice(
                x_sh, (0, 0, 0, h0, w0),
                (B, M, C_in_local,
                 h0 + (H_out - 1) * stride[0] + 1,
                 w0 + (W_out - 1) * stride[1] + 1),
                (1, 1, 1, stride[0], stride[1])))           # (B,M,Cl,Ho,Wo)
    CK = C_in_local * KH * KW
    S = H_out * W_out
    col = jnp.stack(taps, axis=3)                           # (B,M,Cl,KH*KW,Ho,Wo)
    col = col.reshape(B, M, CK, S)
    # fold batch into the lane axis: (M, CK, B*S)
    col = jnp.transpose(col, (1, 2, 0, 3)).reshape(M, CK, B * S)

    # --- pad to TPU-friendly shapes -------------------------------------------
    N = B * S
    lane_tile = max(128, _round_up(int(lane_tile), 128))
    TN = min(lane_tile, _round_up(N, 128))                  # lane tile, 128-aligned
    N_pad = _round_up(N, TN)
    CK_pad = _round_up(CK, 8)                               # sublane multiple
    C_out_pad = _round_up(C_out, 8)

    x_unf = jnp.pad(col, ((0, 0), (0, CK_pad - CK), (0, N_pad - N)))
    x_unf = x_unf.astype(compute_dtype)

    w_flat = weight_shards.reshape(M, C_out, CK)
    w_flat = jnp.pad(w_flat, ((0, 0), (0, C_out_pad - C_out), (0, CK_pad - CK)))
    w_flat = w_flat.astype(compute_dtype)

    if bias is None:
        bias = jnp.zeros((C_out,), dtype=jnp.float32)
    b2 = jnp.pad(bias.astype(jnp.float32), (0, C_out_pad - C_out))
    b2 = b2.reshape(C_out_pad, 1)

    grid = (N_pad // TN, M)   # shard/reduction axis LAST (must stay innermost)

    out_flat = pl.pallas_call(
        _conv_rs_kernel,
        out_shape=jax.ShapeDtypeStruct((C_out_pad, N_pad), jnp.float32),
        grid_spec=pltpu.PrefetchScalarGridSpec(
            num_scalar_prefetch=0,
            grid=grid,
            in_specs=[
                # per-(lane-tile, shard) im2col block
                pl.BlockSpec((1, CK_pad, TN), lambda n, m: (m, 0, n)),
                # all shards' weights, constant index -> DMA'd once, VMEM resident
                pl.BlockSpec((M, C_out_pad, CK_pad), lambda n, m: (0, 0, 0)),
                # bias (f32)
                pl.BlockSpec((C_out_pad, 1), lambda n, m: (0, 0)),
            ],
            out_specs=pl.BlockSpec((C_out_pad, TN), lambda n, m: (0, n)),
        ),
        compiler_params=pltpu.CompilerParams(
            dimension_semantics=("parallel", "arbitrary"),
            vmem_limit_bytes=48 * 1024 * 1024),
    )(x_unf, w_flat, b2)

    out = out_flat[:C_out, :N].reshape(C_out, B, H_out, W_out)
    return jnp.transpose(out, (1, 0, 2, 3)).astype(x.dtype)


def init_params(key, in_channels, out_channels, kernel_size, num_shards,
                groups=1, dtype=jnp.float32):
    """Deterministic kaiming_uniform(a=sqrt(5)) per-shard weight init + bias,
    mirroring reset_parameters() of the PyTorch module."""
    KH, KW = kernel_size
    assert in_channels % num_shards == 0
    c_in_local = in_channels // num_shards
    k_w, k_b = jax.random.split(key)
    fan_in_local = (c_in_local // groups) * KH * KW
    w_bound = 1.0 / math.sqrt(fan_in_local)          # kaiming_uniform, a=sqrt(5)
    weight_shards = jax.random.uniform(
        k_w, (num_shards, out_channels, c_in_local // groups, KH, KW),
        minval=-w_bound, maxval=w_bound, dtype=dtype)
    fan_in_global = (in_channels // groups) * KH * KW
    b_bound = 1.0 / math.sqrt(fan_in_global)
    bias = jax.random.uniform(k_b, (out_channels,),
                              minval=-b_bound, maxval=b_bound, dtype=dtype)
    return weight_shards, bias


if __name__ == "__main__":
    # Small config consistent with the module: out_channels < in_channels
    # (reduce-scatter variant), P_x = [1, 2, 1, 1] -> M = 2 channel shards.
    B, C_in, H, W = 2, 8, 16, 16
    C_out, K = 4, (3, 3)
    M = 2
    stride, padding, dilation = (1, 1), (1, 1), (1, 1)

    key = jax.random.PRNGKey(0)
    kx, kp = jax.random.split(key)
    x = jax.random.normal(kx, (B, C_in, H, W), dtype=jnp.float32)
    weight_shards, bias = init_params(kp, C_in, C_out, K, M)

    out = distributed_channel_rs_conv2d(
        x, weight_shards, bias, stride=stride, padding=padding,
        dilation=dilation, lane_tile=256)   # 2 lane tiles -> both v7x cores fed
    out = jax.block_until_ready(out)

    # Reference: the distributed forward (partial convs + sum reduce-scatter)
    # is globally equivalent to a plain conv2d with the assembled weight.
    w_global = jnp.transpose(weight_shards, (1, 0, 2, 3, 4)).reshape(
        C_out, C_in, K[0], K[1])
    ref = lax.conv_general_dilated(
        x, w_global, window_strides=stride,
        padding=[(padding[0], padding[0]), (padding[1], padding[1])],
        rhs_dilation=dilation,
        dimension_numbers=("NCHW", "OIHW", "NCHW"),
        precision=lax.Precision.HIGHEST)
    ref = ref + bias[None, :, None, None]

    np.testing.assert_allclose(np.asarray(out), np.asarray(ref),
                               rtol=1e-4, atol=1e-4)
    print("KERNEL_OK")
</pallas_src>

<mosaic_0001>
module attributes {stable_mosaic.version = 11 : i64} {
  func.func @_conv_rs_kernel(%arg0: i32, %arg1: i32, %arg2: memref<1x40x256xf32, #tpu.memory_space<vmem>>, %arg3: memref<2x8x40xf32, #tpu.memory_space<vmem>>, %arg4: memref<8x1xf32, #tpu.memory_space<vmem>>, %arg5: memref<8x256xf32, #tpu.memory_space<vmem>>) attributes {dimension_semantics = [#tpu.dimension_semantics<parallel>, #tpu.dimension_semantics<arbitrary>], iteration_bounds = array<i64: 2, 2>, scalar_prefetch = 0 : i64, scratch_operands = 0 : i64, tpu.core_type = #tpu.core_type<tc>, window_params = [{transform_indices = @transform_0, window_bounds = array<i64: 1, 40, 256>}, {pipeline_mode = #tpu.pipeline_mode<synchronous>, transform_indices = @transform_1, window_bounds = array<i64: 2, 8, 40>}, {pipeline_mode = #tpu.pipeline_mode<synchronous>, transform_indices = @transform_2, window_bounds = array<i64: 8, 1>}, {transform_indices = @transform_3, window_bounds = array<i64: 8, 256>}]} {
    %c0_i32 = arith.constant 0 : i32
    %0 = arith.cmpi eq, %arg1, %c0_i32 : i32
    %1 = arith.extui %0 : i1 to i32
    %c0_i32_0 = arith.constant 0 : i32
    %2 = arith.cmpi ne, %1, %c0_i32_0 : i32
    scf.if %2 {
      %c0_9 = arith.constant 0 : index
      %c0_10 = arith.constant 0 : index
      %12 = vector.load %arg4[%c0_9, %c0_10] : memref<8x1xf32, #tpu.memory_space<vmem>>, vector<8x1xf32>
      %13 = vector.shape_cast %12 : vector<8x1xf32> to vector<8x1xf32>
      %14 = vector.broadcast %13 : vector<8x1xf32> to vector<8x256xf32>
      %c0_11 = arith.constant 0 : index
      %c0_12 = arith.constant 0 : index
      %15 = vector.load %arg5[%c0_11, %c0_12] : memref<8x256xf32, #tpu.memory_space<vmem>>, vector<8x256xf32>
      tpu.vector_store %arg5[%c0_11, %c0_12], %14 {strides = array<i32>} : memref<8x256xf32, #tpu.memory_space<vmem>>, vector<8x256xf32>,
    } else {
    }
    %c0 = arith.constant 0 : index
    %c0_1 = arith.constant 0 : index
    %3 = vector.load %arg5[%c0, %c0_1] : memref<8x256xf32, #tpu.memory_space<vmem>>, vector<8x256xf32>
    %4 = arith.index_cast %arg1 : i32 to index
    %c0_2 = arith.constant 0 : index
    %c0_3 = arith.constant 0 : index
    %5 = vector.load %arg3[%4, %c0_2, %c0_3] : memref<2x8x40xf32, #tpu.memory_space<vmem>>, vector<1x8x40xf32>
    %6 = vector.shape_cast %5 : vector<1x8x40xf32> to vector<8x40xf32>
    %c0_4 = arith.constant 0 : index
    %c0_5 = arith.constant 0 : index
    %c0_6 = arith.constant 0 : index
    %7 = vector.load %arg2[%c0_4, %c0_5, %c0_6] : memref<1x40x256xf32, #tpu.memory_space<vmem>>, vector<1x40x256xf32>
    %8 = vector.shape_cast %7 : vector<1x40x256xf32> to vector<40x256xf32>
    %cst = arith.constant dense<0.000000e+00> : vector<8x256xf32>
    %9 = tpu.matmul %6, %8, %cst {dimension_numbers = #tpu.dot_dimension_numbers<[1], [0], [0], [1], [0, 0, 1, 1], [], []>} : vector<8x40xf32>, vector<40x256xf32>, vector<8x256xf32> -> vector<8x256xf32>
    %10 = arith.addf %3, %9 : vector<8x256xf32>
    %c0_7 = arith.constant 0 : index
    %c0_8 = arith.constant 0 : index
    %11 = vector.load %arg5[%c0_7, %c0_8] : memref<8x256xf32, #tpu.memory_space<vmem>>, vector<8x256xf32>
    tpu.vector_store %arg5[%c0_7, %c0_8], %10 {strides = array<i32>} : memref<8x256xf32, #tpu.memory_space<vmem>>, vector<8x256xf32>,
    return
  }
  func.func @transform_0(%arg0: i32, %arg1: i32) -> (i32, i32, i32) {
    %c0_i32 = arith.constant 0 : i32
    %c0_i32_0 = arith.constant 0 : i32
    return %arg1, %c0_i32, %arg0 : i32, i32, i32
  }
  func.func @transform_1(%arg0: i32, %arg1: i32) -> (i32, i32, i32) {
    %c0_i32 = arith.constant 0 : i32
    %c0_i32_0 = arith.constant 0 : i32
    %c0_i32_1 = arith.constant 0 : i32
    %c0_i32_2 = arith.constant 0 : i32
    return %c0_i32, %c0_i32_0, %c0_i32_1 : i32, i32, i32
  }
  func.func @transform_2(%arg0: i32, %arg1: i32) -> (i32, i32) {
    %c0_i32 = arith.constant 0 : i32
    %c0_i32_0 = arith.constant 0 : i32
    %c0_i32_1 = arith.constant 0 : i32
    return %c0_i32, %c0_i32_0 : i32, i32
  }
  func.func @transform_3(%arg0: i32, %arg1: i32) -> (i32, i32) {
    %c0_i32 = arith.constant 0 : i32
    %c0_i32_0 = arith.constant 0 : i32
    return %c0_i32, %arg0 : i32, i32
  }
}

</mosaic_0001>

<llo_original>
// kernel: tpu_custom_call.1
$region0: #{tpu_custom_call.1}
  #allocation0 [shape = 'u32[]', space=smem, size = 0x4, offset = 0x4, fixed_abs, tag = 'smem constant byte address 0x4 - core index']
  #allocation1 [shape = 'u32[72,128]{1,0:T(1,128)}', space=vmem, size = 0x9000, scoped, tag = 'internal scratch']
  %s0 = inlined_call_operand.hbm [shape: f32[2,40,512], index: 0, kind: input, shape index: {}]
  %s1 = inlined_call_operand.hbm [shape: f32[2,8,40], index: 1, kind: input, shape index: {}]
  %s2 = inlined_call_operand.vmem [shape: f32[8,1], index: 2, kind: input, shape index: {}]
  %s3 = inlined_call_operand.hbm [shape: f32[8,512], index: 3, kind: output, shape index: {}]
  %s4 = sld [smem:[#allocation0]]
  $region57: #{tpu_custom_call.1} parent=0
    _
  %s6 = ssub.s32 1, %s4
  %s7 = scalar_select 0, %s6, %s4
  $region1: #{tpu_custom_call.1} parent=0
    #allocation2 [shape = 'u8[81920]{0}', space=vmem, size = 0x14000, scoped, tag = 'input window, operand 0']
    #allocation3 [shape = 's32[2]{0}', space=sflag, size = 0x8, scoped, tag = 'scoped memory for tpu_custom_call.1']
    #allocation4 [shape = 's32[2]{0}', space=sflag, size = 0x8, scoped, tag = 'scoped memory for tpu_custom_call.1']
    #allocation5 [shape = 'u8[8192]{0}', space=vmem, size = 0x2000, scoped, tag = 'input window, operand 1, single buffered']
    #allocation6 [shape = 's32[1]{0}', space=sflag, size = 0x4, scoped, tag = 'scoped memory for tpu_custom_call.1']
    #allocation7 [shape = 'u8[16384]{0}', space=vmem, size = 0x4000, scoped, tag = 'output window, operand 0']
    %8 = vsyncpa [#allocation3], 0
    %s9 = scalar_lea.sflag [#allocation3], 1
    %10 = vsyncpa %s9, 0
    %11 = vsyncpa [#allocation6], 0
    %12 = vsyncpa [#allocation4], 0
    %s13 = scalar_lea.sflag [#allocation4], 1
    %14 = vsyncpa %s13, 0
    loop: start=0, step=1, limit=6
    $region2: #{tpu_custom_call.1} parent=1 // loop_pre_header
      _
    $region3: #{tpu_custom_call.1} parent=1 // loop_header
      %s16 = sphi 0, %s20
      %p17 = scmp.ge.s32.totalorder %s16, 6
      %s23 = sphi 0, %s35
      %s24 = sphi 0, %s31
      %s25 = sphi 0, %s23
      %s26 = sphi 0, %s24
      %s27 = sphi 0, %s25
      %s28 = sphi 0, %s26
      %s40 = sphi 0, %s42
      %s43 = sphi 0, %s40
      %s44 = sphi 0, %s43
      %s60 = sphi 0, %s44
      %s64 = sphi 0, %s64
      %s66 = sphi 0, %s64
      %s67 = sphi 0, %s66
      %s81 = sphi 0, %s67
      %s85 = sphi 0, %s85
      %s87 = sphi 0, %s85
      %s88 = sphi 0, %s87
      %s102 = sphi 0, %s88
      %s108 = sphi 0, %s110
      %s111 = sphi 0, %s108
      %s112 = sphi 0, %s111
      %s128 = sphi 0, %s112
    $region4: #{tpu_custom_call.1} parent=1 // loop_header_branch
      %19 = sbr.rel (%p17) target = $region8
    $region5: #{tpu_custom_call.1} parent=1 // loop_body
      %s21 = ssub.s32 %s16, 1
      %s22 = ssub.s32 %s16, 2
      %s29 = sadd.s32 1, %s24
      %p30 = scmp.ge.s32.totalorder %s29, 2
      %s31 = scalar_select %p30, 0, %s29
      %s32 = sadd.s32 1, %s23
      %s33 = scalar_select %p30, %s32, %s23
      %p34 = scmp.ge.s32.totalorder %s33, 2
      %s35 = scalar_select %p34, 0, %s33
      %s36 = ssub.s32 %s24, %s31
      %s37 = ssub.s32 %s23, %s35
      %s38 = sor.u32 %s36, %s37
      %p39 = scmp.eq.s32.totalorder %s38, 0
      %s41 = sadd.s32 %s40, 1
      %s42 = scalar_select %p39, %s40, %s41
      %p45 = pneg %p39
      %p46 = scmp.eq.s32.totalorder %s16, 3
      %p47 = por %p45, %p46
      %p48 = scmp.ne.s32.totalorder %s40, %s43
      %p49 = scmp.eq.s32.totalorder %s16, 0
      %p50 = por %p48, %p49
      %p51 = scmp.ne.s32.totalorder %s40, %s43
      %p52 = scmp.eq.s32.totalorder %s21, 3
      %p53 = por %p51, %p52
      %p54 = scmp.ne.s32.totalorder %s43, %s44
      %p55 = scmp.eq.s32.totalorder %s21, 0
      %p56 = por %p54, %p55
      %p57 = scmp.ne.s32.totalorder %s43, %s44
      %p58 = scmp.eq.s32.totalorder %s22, 3
      %p59 = por %p57, %p58
      %p61 = scmp.ne.s32.totalorder %s44, %s60
      %p62 = scmp.eq.s32.totalorder %s22, 0
      %p63 = por %p61, %p62
      %s65 = sadd.s32 %s64, 1
      %p68 = scmp.eq.s32.totalorder %s16, 3
      %p69 = scmp.ne.s32.totalorder %s64, %s66
      %p70 = scmp.eq.s32.totalorder %s16, 0
      %p71 = por %p69, %p70
      %p72 = scmp.ne.s32.totalorder %s64, %s66
      %p73 = scmp.eq.s32.totalorder %s21, 3
      %p74 = por %p72, %p73
      %p75 = scmp.ne.s32.totalorder %s66, %s67
      %p76 = scmp.eq.s32.totalorder %s21, 0
      %p77 = por %p75, %p76
      %p78 = scmp.ne.s32.totalorder %s66, %s67
      %p79 = scmp.eq.s32.totalorder %s22, 3
      %p80 = por %p78, %p79
      %p82 = scmp.ne.s32.totalorder %s67, %s81
      %p83 = scmp.eq.s32.totalorder %s22, 0
      %p84 = por %p82, %p83
      %s86 = sadd.s32 %s85, 1
      %p89 = scmp.eq.s32.totalorder %s16, 3
      %p90 = scmp.ne.s32.totalorder %s85, %s87
      %p91 = scmp.eq.s32.totalorder %s16, 0
      %p92 = por %p90, %p91
      %p93 = scmp.ne.s32.totalorder %s85, %s87
      %p94 = scmp.eq.s32.totalorder %s21, 3
      %p95 = por %p93, %p94
      %p96 = scmp.ne.s32.totalorder %s87, %s88
      %p97 = scmp.eq.s32.totalorder %s21, 0
      %p98 = por %p96, %p97
      %p99 = scmp.ne.s32.totalorder %s87, %s88
      %p100 = scmp.eq.s32.totalorder %s22, 3
      %p101 = por %p99, %p100
      %p103 = scmp.ne.s32.totalorder %s88, %s102
      %p104 = scmp.eq.s32.totalorder %s22, 0
      %p105 = por %p103, %p104
      %s106 = ssub.s32 %s23, %s35
      %p107 = scmp.eq.s32.totalorder %s106, 0
      %s109 = sadd.s32 %s108, 1
      %s110 = scalar_select %p107, %s108, %s109
      %p113 = pneg %p107
      %p114 = scmp.eq.s32.totalorder %s16, 3
      %p115 = por %p113, %p114
      %p116 = scmp.ne.s32.totalorder %s108, %s111
      %p117 = scmp.eq.s32.totalorder %s16, 0
      %p118 = por %p116, %p117
      %p119 = scmp.ne.s32.totalorder %s108, %s111
      %p120 = scmp.eq.s32.totalorder %s21, 3
      %p121 = por %p119, %p120
      %p122 = scmp.ne.s32.totalorder %s111, %s112
      %p123 = scmp.eq.s32.totalorder %s21, 0
      %p124 = por %p122, %p123
      %p125 = scmp.ne.s32.totalorder %s111, %s112
      %p126 = scmp.eq.s32.totalorder %s22, 3
      %p127 = por %p125, %p126
      %p129 = scmp.ne.s32.totalorder %s112, %s128
      %p130 = scmp.eq.s32.totalorder %s22, 0
      %p131 = por %p129, %p130
      %p132 = scmp.le.s32.totalorder 1, %s16
      %p133 = scmp.lt.s32.totalorder %s16, 5
      %p134 = pnand %p132, %p133
      %p135 = pneg %p134
      // Predicated region
      $region9: #{tpu_custom_call.1} parent=5 // pred_check
        _
      $region10: #{tpu_custom_call.1} parent=5 // pred_check_branch
        %137 = sbr.rel (%p134) target = $region12
      $region11: #{tpu_custom_call.1} parent=5 // pred_region
        %s138 = ssub.s32 %s16, 1
        // Predicated region
        $region13: #{tpu_custom_call.1} parent=11 // pred_check
          %p139 = pneg %p77
        $region14: #{tpu_custom_call.1} parent=11 // pred_check_branch
          %141 = sbr.rel (%p139) target = $region16
        $region15: #{tpu_custom_call.1} parent=11 // pred_region
          %143 = vsyncadd [#allocation6], 0
          %s144 = sshll.u32 %s1, 4
          %s145 = int_to_ptr.hbm [resolvable:$true] %s144
          %s146 = sshll.u32 [#allocation5], 4
          %s147 = int_to_ptr.vmem [resolvable:$true] %s146
          %152 = dma.hbm_to_vmem [thread:$0]  %s145, 256, %s147, [#allocation6], 128, 128, 8
        $region16: #{tpu_custom_call.1} parent=11 // pred_fallthru
          _
        // Predicated region
        $region17: #{tpu_custom_call.1} parent=11 // pred_check
          %p153 = pneg %p98
        $region18: #{tpu_custom_call.1} parent=11 // pred_check_branch
          %155 = sbr.rel (%p153) target = $region20
        $region19: #{tpu_custom_call.1} parent=11 // pred_region
          _
        $region20: #{tpu_custom_call.1} parent=11 // pred_fallthru
          _
      $region12: #{tpu_custom_call.1} parent=5 // pred_fallthru
        _
      %p156 = scmp.lt.s32.totalorder %s16, 4
      // Predicated region
      $region21: #{tpu_custom_call.1} parent=5 // pred_check
        %p157 = pneg %p156
      $region22: #{tpu_custom_call.1} parent=5 // pred_check_branch
        %159 = sbr.rel (%p157) target = $region24
      $region23: #{tpu_custom_call.1} parent=5 // pred_region
        // Predicated region
        $region25: #{tpu_custom_call.1} parent=23 // pred_check
          %p160 = pneg %p50
        $region26: #{tpu_custom_call.1} parent=23 // pred_check_branch
          %162 = sbr.rel (%p160) target = $region28
        $region27: #{tpu_custom_call.1} parent=23 // pred_region
          %s163 = sand.u32 %s40, 1
          %s164 = scalar_lea.sflag [#allocation3], %s163
          %s165 = sand.u32 %s40, 1
          %s166 = smul.addr %s165, 80
          %s167 = scalar_lea.vmem [#allocation2], %s166
          %s168 = smul.u32 2, %s23
          %170 = vsyncadd %s164, 0
          %s171 = smul.addr %s24, 20
          %s172 = sadd.s32 %s168, %s171
          %s173 = smul.addr %s172, 8
          %s174 = scalar_lea.hbm %s0, %s173
          %s175 = sshll.u32 %s174, 4
          %s176 = int_to_ptr.hbm [resolvable:$true] %s175
          %s177 = sshll.u32 %s167, 4
          %s178 = int_to_ptr.vmem [resolvable:$true] %s177
          %183 = dma.hbm_to_vmem [thread:$0]  %s176, 1280, %s178, %s164, 512, 256, 16
        $region28: #{tpu_custom_call.1} parent=23 // pred_fallthru
          _
      $region24: #{tpu_custom_call.1} parent=5 // pred_fallthru
        _
      %p184 = scmp.le.s32.totalorder 1, %s16
      %p185 = scmp.lt.s32.totalorder %s16, 5
      %p186 = pnand %p184, %p185
      %p187 = pneg %p186
      // Predicated region
      $region29: #{tpu_custom_call.1} parent=5 // pred_check
        _
      $region30: #{tpu_custom_call.1} parent=5 // pred_check_branch
        %189 = sbr.rel (%p186) target = $region32
      $region31: #{tpu_custom_call.1} parent=5 // pred_region
        %s190 = ssub.s32 %s16, 1
        %s191 = sand.u32 %s43, 1
        %s192 = scalar_lea.sflag [#allocation3], %s191
        %s193 = sand.u32 %s43, 1
        %s194 = smul.addr %s193, 80
        %s195 = scalar_lea.vmem [#allocation2], %s194
        // Predicated region
        $region33: #{tpu_custom_call.1} parent=31 // pred_check
          %p196 = pneg %p56
        $region34: #{tpu_custom_call.1} parent=31 // pred_check_branch
          %198 = sbr.rel (%p196) target = $region36
        $region35: #{tpu_custom_call.1} parent=31 // pred_region
          %200 = dma.done %s192, 1280
        $region36: #{tpu_custom_call.1} parent=31 // pred_fallthru
          _
        // Predicated region
        $region37: #{tpu_custom_call.1} parent=31 // pred_check
          %p201 = pneg %p77
        $region38: #{tpu_custom_call.1} parent=31 // pred_check_branch
          %203 = sbr.rel (%p201) target = $region40
        $region39: #{tpu_custom_call.1} parent=31 // pred_region
          %205 = dma.done [#allocation6], 256
        $region40: #{tpu_custom_call.1} parent=31 // pred_fallthru
          _
        %s206 = sand.u32 %s43, 1
        %s207 = scalar_lea.sflag [#allocation3], %s206
        %s208 = sand.u32 %s43, 1
        %s209 = smul.addr %s208, 80
        %s210 = scalar_lea.vmem [#allocation2], %s209
        %p211 = pneg %p56
        %p212 = pneg %p53
        %p213 = pneg %p77
        %p214 = pneg %p74
        %p215 = pneg %p98
        %p216 = pneg %p95
        %p217 = pneg %p124
        %p218 = pneg %p121
        %s219 = sand.u32 %s111, 1
        %s220 = scalar_lea.sflag [#allocation4], %s219
        %s221 = sand.u32 %s111, 1
        %s222 = smul.addr %s221, 16
        %s223 = scalar_lea.vmem [#allocation7], %s222
        %s224 = smul.u32 2, %s25
        %s225 = smul.u32 2, %s25
        %p226 = scmp.eq.s32.totalorder %s26, 0
        // Predicated region
        $region41: #{tpu_custom_call.1} parent=31 // pred_check
          %p227 = pneg %p226
        $region42: #{tpu_custom_call.1} parent=31 // pred_check_branch
          %229 = sbr.rel (%p227) target = $region44
        $region43: #{tpu_custom_call.1} parent=31 // pred_region
          %v230 = vld [vmem:[%s2] sm:$0xff]
          %232 = vset.pattern.permute.xlu0 0
          %233 = vperm.xlu0 %232, %v230
          %v234 = vpop.permute.xlu0 %233
          %236 = vst [vmem:[%s223] sm:$0xff] %v234
          %237 = vst [vmem:[%s223 + $0x8] sm:$0xff] %v234
        $region44: #{tpu_custom_call.1} parent=31 // pred_fallthru
          _
        %v238 = vld [vmem:[%s223] sm:$0xff]
        %v239 = vld [vmem:[%s223 + $0x8] sm:$0xff]
        %s240 = smul.u32 %s26, 8
        %s241 = scalar_lea.vmem [#allocation5], %s240
        %v242 = vld [vmem:[%s241] sm:$0xff]
        %v243 = vld [vmem:[%s195] sm:$0xff]
        %v244 = vld [vmem:[%s195 + $0x8] sm:$0xff]
        %v245 = vld [vmem:[%s195 + $0x10] sm:$0xff]
        %v246 = vld [vmem:[%s195 + $0x18] sm:$0xff]
        %v247 = vld [vmem:[%s195 + $0x20] sm:$0xff]
        %v248 = vld [vmem:[%s195 + $0x28] sm:$0xff]
        %v249 = vld [vmem:[%s195 + $0x30] sm:$0xff]
        %v250 = vld [vmem:[%s195 + $0x38] sm:$0xff]
        %v251 = vld [vmem:[%s195 + $0x40] sm:$0xff]
        %v252 = vld [vmem:[%s195 + $0x48] sm:$0xff]
        %vm253 = vcmask 326656
        %v255 = vsel %vm253, %v242, 0
        %257 = vmatpush.msra.mxu0 0.0
        %258 = vmatpush.msra.mxu0 0.0
        %259 = vmatpush.msra.mxu0 0.0
        %260 = vmatpush.msra.mxu0 0.0
        %261 = vmatpush.msra.mxu0 0.0
        %262 = vmatpush.msra.mxu0 0.0
        %263 = vmatpush.msra.mxu0 0.0
        %264 = vmatpush.msra.mxu0 0.0
        %265 = vmatpush.msra.mxu0 0.0
        %266 = vmatpush.msra.mxu0 0.0
        %267 = vmatpush.msra.mxu0 0.0
        %268 = vmatpush.msra.mxu0 %v251
        %269 = vmatpush.msra.mxu0 %v249
        %270 = vmatpush.msra.mxu0 %v247
        %271 = vmatpush.msra.mxu0 %v245
        %272 = vmatpush.msra.mxu0 %v243
        %273 = vmatmul.f32.gmra.mxu0 %v255
        %v274 = vpop.f32.mrf.mxu0
        %v275 = vadd.f32 0.0, %v274
        %276 = vdwg.mxu0
        %277 = vmatpush.msra.mxu0 0.0
        %278 = vmatpush.msra.mxu0 0.0
        %279 = vmatpush.msra.mxu0 0.0
        %280 = vmatpush.msra.mxu0 0.0
        %281 = vmatpush.msra.mxu0 0.0
        %282 = vmatpush.msra.mxu0 0.0
        %283 = vmatpush.msra.mxu0 0.0
        %284 = vmatpush.msra.mxu0 0.0
        %285 = vmatpush.msra.mxu0 0.0
        %286 = vmatpush.msra.mxu0 0.0
        %287 = vmatpush.msra.mxu0 0.0
        %288 = vmatpush.msra.mxu0 %v252
        %289 = vmatpush.msra.mxu0 %v250
        %290 = vmatpush.msra.mxu0 %v248
        %291 = vmatpush.msra.mxu0 %v246
        %292 = vmatpush.msra.mxu0 %v244
        %293 = vmatmul.f32.gmra.mxu0 %v255
        %v294 = vpop.f32.mrf.mxu0
        %v295 = vadd.f32 0.0, %v294
        %296 = vdwg.mxu0
        %v297 = vadd.f32 %v238, %v275
        %v298 = vadd.f32 %v239, %v295
        %299 = vst [vmem:[%s223] sm:$0xff] %v297
        %300 = vst [vmem:[%s223 + $0x8] sm:$0xff] %v298
        %s301 = sand.u32 %s111, 1
        %s302 = scalar_lea.sflag [#allocation4], %s301
        %s303 = sand.u32 %s111, 1
        %s304 = smul.addr %s303, 16
        %s305 = scalar_lea.vmem [#allocation7], %s304
        // Predicated region
        $region45: #{tpu_custom_call.1} parent=31 // pred_check
          %p306 = pneg %p121
        $region46: #{tpu_custom_call.1} parent=31 // pred_check_branch
          %308 = sbr.rel (%p306) target = $region48
        $region47: #{tpu_custom_call.1} parent=31 // pred_region
          %s309 = smul.u32 2, %s25
          %311 = vsyncadd %s302, 0
          %s312 = smul.addr %s309, 8
          %s313 = scalar_lea.hbm %s3, %s312
          %s315 = sshll.u32 %s305, 4
          %s316 = int_to_ptr.vmem [resolvable:$true] %s315
          %s317 = sshll.u32 %s313, 4
          %s318 = int_to_ptr.hbm [resolvable:$true] %s317
          %320 = dma.vmem_to_hbm [thread:$0]  %s316, 256, %s318, %s302
        $region48: #{tpu_custom_call.1} parent=31 // pred_fallthru
          _
      $region32: #{tpu_custom_call.1} parent=5 // pred_fallthru
        _
      %p321 = scmp.le.s32.totalorder 2, %s16
      // Predicated region
      $region49: #{tpu_custom_call.1} parent=5 // pred_check
        %p322 = pneg %p321
      $region50: #{tpu_custom_call.1} parent=5 // pred_check_branch
        %324 = sbr.rel (%p322) target = $region52
      $region51: #{tpu_custom_call.1} parent=5 // pred_region
        %s325 = ssub.s32 %s16, 2
        // Predicated region
        $region53: #{tpu_custom_call.1} parent=51 // pred_check
          %p326 = pneg %p127
        $region54: #{tpu_custom_call.1} parent=51 // pred_check_branch
          %328 = sbr.rel (%p326) target = $region56
        $region55: #{tpu_custom_call.1} parent=51 // pred_region
          %s329 = sand.u32 %s112, 1
          %s330 = scalar_lea.sflag [#allocation4], %s329
          %s331 = sand.u32 %s112, 1
          %s332 = smul.addr %s331, 16
          %s333 = scalar_lea.vmem [#allocation7], %s332
          %335 = dma.done %s330, 256
        $region56: #{tpu_custom_call.1} parent=51 // pred_fallthru
          _
      $region52: #{tpu_custom_call.1} parent=5 // pred_fallthru
        _
    $region6: #{tpu_custom_call.1} parent=1 // loop_footer
      %s20 = sadd.s32 1, %s16
    $region7: #{tpu_custom_call.1} parent=1 // loop_footer_branch
      %15 = sbr.rel target = $region3
    $region8: #{tpu_custom_call.1} parent=1 // loop_exit
      _
    %336 = vsyncpa [#allocation3], 1
    %s337 = scalar_lea.sflag [#allocation3], 1
    %338 = vsyncpa %s337, 1
    %339 = vsyncpa [#allocation6], 1
    %340 = vsyncpa [#allocation4], 1
    %s341 = scalar_lea.sflag [#allocation4], 1
    %342 = vsyncpa %s341, 1

</llo_original>
